<compile_context>
chip_gen: v5e
topology: v5e:2x2
jax: 0.10.0
libtpu: 0.0.40
codegen_flags: <defaults>
</compile_context>

<pallas_src>
import functools

import jax
import jax.numpy as jnp
from jax.experimental import pallas as pl
from jax.experimental.pallas import tpu as pltpu

_LANES = 128  # vreg lane width; also the fold width of the f32 accumulator


def _fold_columns(x_ref, lo, hi, valid):
    """Sum 128-column groups of x_ref[:, lo:hi) into an f32 (rows, 128) value.

    Uses only lane-aligned static slices + element-wise adds (pure VPU work,
    no XLU, no relayout).  Columns with index >= `valid` contribute zero; the
    mask is applied only to the single straddling 128-wide leaf, so the fully
    valid (hot) path carries no masking cost at all.  `lo`, `hi`, `valid` are
    static Python ints and hi - lo is a positive multiple of 128.
    """
    width = hi - lo
    if width == _LANES:
        leaf = x_ref[:, lo:hi].astype(jnp.float32)
        if valid >= hi:
            return leaf
        lane = jax.lax.broadcasted_iota(jnp.int32, leaf.shape, 1)
        return jnp.where(lane < (valid - lo), leaf, 0.0)
    mid = lo + ((width // 2) // _LANES) * _LANES
    left = _fold_columns(x_ref, lo, mid, valid)
    if valid <= mid:            # right half entirely past the valid range
        return left
    return left + _fold_columns(x_ref, mid, hi, valid)


def _c3d_classifier_kernel(x_ref, w_enc_ref, b_enc_ref, w_fc_ref, b_fc_ref,
                           out_ref, acc_ref, *, b_tile, c, s_total, s_tile):
    """Streamed mean-pool + stand-in encoder + classifier head.

    x_ref     : (b_tile*c, s_tile)    current video tile (native dtype)
    w_enc_ref : (b_tile*c, 128)       stand-in encoder weight, tiled per batch row
    b_enc_ref : (1, 128)
    w_fc_ref  : (128, num_classes)
    b_fc_ref  : (1, num_classes)
    out_ref   : (b_tile, num_classes) log-probabilities
    acc_ref   : (b_tile*c, 128) f32   running (scaled) partial sums over S
    """
    s_idx = pl.program_id(1)
    n_s = pl.num_programs(1)
    bc = b_tile * c
    inv_s = 1.0 / float(s_total)   # scale per step: keeps the accumulator small

    @pl.when(s_idx == 0)
    def _():
        acc_ref[...] = jnp.zeros_like(acc_ref)

    if s_tile % _LANES != 0:
        # Single-block case with S not a multiple of 128 (s_tile == s_total,
        # every column valid).  Runs once per batch tile -- cost is negligible.
        x = x_ref[...].astype(jnp.float32)
        acc_ref[:, 0:1] += jnp.sum(x, axis=-1, keepdims=True) * inv_s
    else:
        def accumulate(valid):
            acc_ref[...] += _fold_columns(x_ref, 0, s_tile, valid) * inv_s

        tail = s_total % s_tile
        if tail == 0:
            accumulate(s_tile)                      # hot path: never masked
        else:
            last = n_s - 1

            @pl.when(s_idx != last)
            def _():
                accumulate(s_tile)                  # hot path: never masked

            @pl.when(s_idx == last)
            def _():
                accumulate(tail)                    # mask only the tail step

    @pl.when(s_idx == n_s - 1)
    def _():
        # Mean over (T, H, W) for every (b, c) row: one cross-lane reduce,
        # only in the finalize step.
        pooled = jnp.sum(acc_ref[...], axis=-1, keepdims=True)      # (bc, 1)
        # Stand-in encoder: Linear(C, 128) over the pooled channels.  The
        # (bc,1)->(b_tile,C) regroup is folded into a tiny 0/1 "gather" matmul
        # (no in-kernel reshape):  feats = gather @ (pooled * tile(w_enc)).
        contrib = pooled * w_enc_ref[...]                           # (bc, 128)
        row = jax.lax.broadcasted_iota(jnp.int32, (b_tile, bc), 0)
        col = jax.lax.broadcasted_iota(jnp.int32, (b_tile, bc), 1)
        lo = row * c
        gather = jnp.logical_and(col >= lo, col < lo + c).astype(jnp.float32)
        feats = jnp.dot(gather, contrib, preferred_element_type=jnp.float32)
        feats = jnp.maximum(feats + b_enc_ref[...], 0.0)            # ReLU

        # Classifier head: Linear(128, num_classes) + LogSoftmax(dim=1).
        logits = jnp.dot(feats, w_fc_ref[...],
                         preferred_element_type=jnp.float32) + b_fc_ref[...]
        m = jnp.max(logits, axis=1, keepdims=True)
        shifted = logits - m
        lse = jnp.log(jnp.sum(jnp.exp(shifted), axis=1, keepdims=True))
        # torch.max(probs, dim=1) preds are discarded in predict(); the module
        # returns the log-probabilities.
        out_ref[...] = shifted - lse


def _vmem_capacity_bytes():
    """Trace-time VMEM capacity query; conservative (v7x) fallback."""
    try:
        return int(pltpu.get_tpu_info().vmem_capacity_bytes)
    except Exception:
        return 64 << 20


def _pick_b_tile(batch, channels, itemsize, target_bc=128):
    """Batch tile such that every block's sublane dim is legal, preferring
    >=2 (ideally even) batch blocks (v7x megacore) and packed sublane counts."""
    pack = {4: 8, 2: 16, 1: 32}.get(itemsize, 8)
    cands = [bt for bt in range(1, batch + 1)
             if batch % bt == 0 and (bt % 8 == 0 or bt == batch)]

    def score(bt):
        g0 = batch // bt
        bc = bt * channels
        return ((g0 < 2),            # v7x: need >=2 batch blocks for both TCs
                (g0 % 2 != 0),       # v7x: ideally an even number of blocks
                (bc % pack != 0),    # sublane packing for narrow dtypes
                abs(bc - target_bc),
                bt)

    return min(cands, key=score)


def _pick_s_tile(s_total, bc_tile, itemsize, max_tile_bytes, max_s_tile=None,
                 max_lane_tiles=256):
    """S tile: largest multiple-of-128 column count within the VMEM/code-size
    budget, preferring a divisor of s_total so no tail mask is ever needed."""
    cap = max_tile_bytes // max(1, bc_tile * itemsize)
    cap = min(cap, max_lane_tiles * _LANES)
    if max_s_tile is not None:
        cap = min(cap, max_s_tile)
    cap = max(cap, _LANES)
    if s_total <= cap:
        return s_total                      # single block, no streaming
    cap = (cap // _LANES) * _LANES
    # Prefer a multiple-of-128 divisor of s_total (mask-free), as long as it
    # does not more than double the number of S steps.
    t = cap
    while t >= _LANES and 2 * t >= cap:
        if s_total % t == 0:
            return t
        t -= _LANES
    return cap                              # masked tail on the last step only


def c3d_classifier_forward(video_batch, params, use_teacher_forcing=False,
                           stream_dtype=None, max_s_tile=None,
                           max_tile_bytes=None, x_buffers=2):
    videos, _captions = video_batch              # captions unused by forward
    if stream_dtype is not None and jnp.dtype(stream_dtype) != videos.dtype:
        # Optional lossy bandwidth optimization: stream a narrower dtype.
        videos = videos.astype(stream_dtype)
    batch, channels, t, h, w = videos.shape
    s_total = t * h * w
    w_enc, b_enc, w_fc, b_fc = params
    num_features = w_enc.shape[1]
    num_classes = w_fc.shape[1]

    # Generation-gated sizing: v7x has 64 MiB VMEM per TC, v5e/v6e have 128 MiB.
    vmem_cap = _vmem_capacity_bytes()
    big_vmem = vmem_cap >= (100 << 20)
    if max_tile_bytes is None:
        max_tile_bytes = (16 << 20) if big_vmem else (8 << 20)

    b_tile = _pick_b_tile(batch, channels, videos.dtype.itemsize)
    bc_tile = b_tile * channels
    # Contiguous reshape (no HBM copy), native dtype -- cast happens in-kernel.
    x = videos.reshape(batch * channels, s_total)
    s_tile = _pick_s_tile(s_total, bc_tile, x.dtype.itemsize,
                          max_tile_bytes, max_s_tile)
    grid = (batch // b_tile, pl.cdiv(s_total, s_tile))

    # Encoder weight tiled per batch row so the in-kernel regroup is a matmul.
    w_enc_t = jnp.tile(w_enc.astype(jnp.float32), (b_tile, 1))   # (bc_tile, F)
    b_enc_f = b_enc.astype(jnp.float32).reshape(1, num_features)
    w_fc_f = w_fc.astype(jnp.float32)
    b_fc_f = b_fc.astype(jnp.float32).reshape(1, num_classes)

    kernel = functools.partial(_c3d_classifier_kernel, b_tile=b_tile,
                               c=channels, s_total=s_total, s_tile=s_tile)

    x_tile_bytes = bc_tile * s_tile * x.dtype.itemsize
    param_bytes = 4 * (w_enc_t.size + b_enc_f.size + w_fc_f.size + b_fc_f.size)
    acc_bytes = bc_tile * _LANES * 4
    n_buf = max(2, x_buffers)
    want = (n_buf + 1) * x_tile_bytes + 4 * param_bytes + acc_bytes + (2 << 20)
    cap_limit = (96 << 20) if big_vmem else (48 << 20)
    vmem_limit = int(min(cap_limit, max(32 << 20, want)))

    cost = pl.CostEstimate(
        flops=(2 * batch * channels * s_total
               + 2 * batch * channels * num_features
               + 2 * batch * num_features * num_classes),
        transcendentals=batch * (num_classes + 1),
        bytes_accessed=(x.size * x.dtype.itemsize + param_bytes
                        + batch * num_classes * 4),
    )

    x_spec_kwargs = {}
    if n_buf != 2:   # only deepen the pipeline if explicitly requested
        x_spec_kwargs["pipeline_mode"] = pl.Buffered(n_buf)
    x_spec = pl.BlockSpec((bc_tile, s_tile), lambda b, s: (b, s),
                          **x_spec_kwargs)

    grid_spec = pltpu.PrefetchScalarGridSpec(
        num_scalar_prefetch=0,
        grid=grid,
        in_specs=[
            x_spec,
            pl.BlockSpec((bc_tile, num_features), lambda b, s: (0, 0)),
            pl.BlockSpec((1, num_features), lambda b, s: (0, 0)),
            pl.BlockSpec((num_features, num_classes), lambda b, s: (0, 0)),
            pl.BlockSpec((1, num_classes), lambda b, s: (0, 0)),
        ],
        out_specs=pl.BlockSpec((b_tile, num_classes), lambda b, s: (b, 0)),
        scratch_shapes=[pltpu.VMEM((bc_tile, _LANES), jnp.float32)],
    )

    return pl.pallas_call(
        kernel,
        out_shape=jax.ShapeDtypeStruct((batch, num_classes), jnp.float32),
        grid_spec=grid_spec,
        compiler_params=pltpu.CompilerParams(
            dimension_semantics=("parallel", "arbitrary"),
            vmem_limit_bytes=vmem_limit),
        cost_estimate=cost,
    )(x, w_enc_t, b_enc_f, w_fc_f, b_fc_f)


def init_params(key, in_channels, num_features=128, num_classes=7):
    k1, k2, k3, k4 = jax.random.split(key, 4)
    # Stand-in encoder projection: (C, 128) + bias (1, 128).
    w_enc = jax.random.normal(k1, (in_channels, num_features), jnp.float32) * 0.5
    b_enc = jax.random.normal(k2, (1, num_features), jnp.float32) * 0.1
    # nn.Linear(128, num_classes) stores (out, in) in torch; we keep (in, out)
    # so the kernel computes feats @ W + b.
    w_fc = jax.random.normal(k3, (num_features, num_classes), jnp.float32) * 0.5
    b_fc = jax.random.normal(k4, (1, num_classes), jnp.float32) * 0.1
    return w_enc, b_enc, w_fc, b_fc


def _reference_forward(videos, params):
    """Pure-JAX reference of the same forward pass (for validation)."""
    w_enc, b_enc, w_fc, b_fc = params
    batch, channels = videos.shape[:2]
    pooled = jnp.mean(videos.astype(jnp.float32).reshape(batch, channels, -1),
                      axis=-1)
    feats = jnp.maximum(pooled @ w_enc + b_enc, 0.0)
    logits = feats @ w_fc + b_fc
    return jax.nn.log_softmax(logits, axis=1)


if __name__ == "__main__":
    key = jax.random.PRNGKey(0)
    k_vid, k_cap, k_par = jax.random.split(key, 3)

    # Small shapes: batch=2, channels=4, T=4, H=W=8  ->  S = 256.
    B, C, T, H, W = 2, 4, 4, 8, 8
    videos_f32 = jax.random.normal(k_vid, (B, C, T, H, W), jnp.float32)
    videos_bf16 = videos_f32.astype(jnp.bfloat16)     # narrow streamed dtype
    captions = jax.random.randint(k_cap, (B, 8), 0, 100)   # unused by forward
    params = init_params(k_par, in_channels=C, num_features=128, num_classes=7)

    # 1) bf16 streamed input, 2 S-steps (s_tile=128 divides 256 -> mask-free).
    probs = jax.block_until_ready(
        c3d_classifier_forward((videos_bf16, captions), params, max_s_tile=128))
    ref = _reference_forward(videos_bf16, params)
    assert probs.shape == (B, 7)
    assert jnp.allclose(jnp.sum(jnp.exp(probs), axis=1), 1.0, atol=1e-4)
    assert jnp.allclose(probs, ref, atol=2e-3, rtol=2e-3), \
        float(jnp.max(jnp.abs(probs - ref)))

    # 2) f32 ragged-S config (S = 4*9*9 = 324): masked tail on the LAST step only.
    videos2 = jax.random.normal(k_vid, (B, C, T, 9, 9), jnp.float32)
    probs2 = jax.block_until_ready(
        c3d_classifier_forward((videos2, captions), params, max_s_tile=128))
    ref2 = _reference_forward(videos2, params)
    assert jnp.allclose(probs2, ref2, atol=2e-3, rtol=2e-3), \
        float(jnp.max(jnp.abs(probs2 - ref2)))

    # 3) Same ragged S as a single block (s_tile == s_total, not a mult of 128).
    probs3 = jax.block_until_ready(
        c3d_classifier_forward((videos2, captions), params))
    assert jnp.allclose(probs3, ref2, atol=2e-3, rtol=2e-3), \
        float(jnp.max(jnp.abs(probs3 - ref2)))

    print("KERNEL_OK")
</pallas_src>

<mosaic_0001>
module attributes {stable_mosaic.version = 11 : i64} {
  func.func @_c3d_classifier_kernel(%arg0: i32, %arg1: i32, %arg2: memref<8x128xbf16, #tpu.memory_space<vmem>>, %arg3: memref<8x128xf32, #tpu.memory_space<vmem>>, %arg4: memref<1x128xf32, #tpu.memory_space<vmem>>, %arg5: memref<128x7xf32, #tpu.memory_space<vmem>>, %arg6: memref<1x7xf32, #tpu.memory_space<vmem>>, %arg7: memref<2x7xf32, #tpu.memory_space<vmem>>, %arg8: memref<8x128xf32, #tpu.memory_space<vmem>>) attributes {dimension_semantics = [#tpu.dimension_semantics<parallel>, #tpu.dimension_semantics<arbitrary>], iteration_bounds = array<i64: 1, 2>, scalar_prefetch = 0 : i64, scratch_operands = 1 : i64, tpu.core_type = #tpu.core_type<tc>, window_params = [{transform_indices = @transform_0, window_bounds = array<i64: 8, 128>}, {pipeline_mode = #tpu.pipeline_mode<synchronous>, transform_indices = @transform_1, window_bounds = array<i64: 8, 128>}, {pipeline_mode = #tpu.pipeline_mode<synchronous>, transform_indices = @transform_2, window_bounds = array<i64: 1, 128>}, {pipeline_mode = #tpu.pipeline_mode<synchronous>, transform_indices = @transform_3, window_bounds = array<i64: 128, 7>}, {pipeline_mode = #tpu.pipeline_mode<synchronous>, transform_indices = @transform_4, window_bounds = array<i64: 1, 7>}, {transform_indices = @transform_5, window_bounds = array<i64: 2, 7>}]} {
    %c0_i32 = arith.constant 0 : i32
    %0 = arith.cmpi eq, %arg1, %c0_i32 : i32
    %1 = arith.extui %0 : i1 to i32
    %c0_i32_0 = arith.constant 0 : i32
    %2 = arith.cmpi ne, %1, %c0_i32_0 : i32
    scf.if %2 {
      %cst_7 = arith.constant 0.000000e+00 : f32
      %13 = vector.broadcast %cst_7 : f32 to vector<8x128xf32>
      %c0_8 = arith.constant 0 : index
      %c0_9 = arith.constant 0 : index
      %14 = vector.load %arg8[%c0_8, %c0_9] : memref<8x128xf32, #tpu.memory_space<vmem>>, vector<8x128xf32>
      tpu.vector_store %arg8[%c0_8, %c0_9], %13 {strides = array<i32>} : memref<8x128xf32, #tpu.memory_space<vmem>>, vector<8x128xf32>,
    } else {
    }
    %c0 = arith.constant 0 : index
    %c0_1 = arith.constant 0 : index
    %3 = vector.load %arg8[%c0, %c0_1] : memref<8x128xf32, #tpu.memory_space<vmem>>, vector<8x128xf32>
    %c0_2 = arith.constant 0 : index
    %c0_3 = arith.constant 0 : index
    %4 = vector.load %arg2[%c0_2, %c0_3] : memref<8x128xbf16, #tpu.memory_space<vmem>>, vector<8x128xbf16>
    %5 = arith.extf %4 : vector<8x128xbf16> to vector<8x128xf32>
    %cst = arith.constant 3.906250e-03 : f32
    %6 = vector.broadcast %cst : f32 to vector<8x128xf32>
    %7 = arith.mulf %5, %6 : vector<8x128xf32>
    %8 = arith.addf %3, %7 : vector<8x128xf32>
    %c0_4 = arith.constant 0 : index
    %c0_5 = arith.constant 0 : index
    %9 = vector.load %arg8[%c0_4, %c0_5] : memref<8x128xf32, #tpu.memory_space<vmem>>, vector<8x128xf32>
    tpu.vector_store %arg8[%c0_4, %c0_5], %8 {strides = array<i32>} : memref<8x128xf32, #tpu.memory_space<vmem>>, vector<8x128xf32>,
    %c1_i32 = arith.constant 1 : i32
    %10 = arith.cmpi eq, %arg1, %c1_i32 : i32
    %11 = arith.extui %10 : i1 to i32
    %c0_i32_6 = arith.constant 0 : i32
    %12 = arith.cmpi ne, %11, %c0_i32_6 : i32
    scf.if %12 {
      %c0_7 = arith.constant 0 : index
      %c0_8 = arith.constant 0 : index
      %13 = vector.load %arg8[%c0_7, %c0_8] : memref<8x128xf32, #tpu.memory_space<vmem>>, vector<8x128xf32>
      %cst_9 = arith.constant dense<0.000000e+00> : vector<8xf32>
      %14 = vector.multi_reduction <add>, %13, %cst_9 [1] : vector<8x128xf32> to vector<8xf32>
      %15 = vector.shape_cast %14 : vector<8xf32> to vector<8x1xf32>
      %c0_10 = arith.constant 0 : index
      %c0_11 = arith.constant 0 : index
      %16 = vector.load %arg3[%c0_10, %c0_11] : memref<8x128xf32, #tpu.memory_space<vmem>>, vector<8x128xf32>
      %17 = vector.broadcast %15 : vector<8x1xf32> to vector<8x128xf32>
      %18 = arith.mulf %17, %16 : vector<8x128xf32>
      %19 = tpu.iota {dimensions = array<i32: 0>} : vector<2x8xi32>
      %20 = tpu.iota {dimensions = array<i32: 1>} : vector<2x8xi32>
      %c4_i32 = arith.constant 4 : i32
      %21 = vector.broadcast %c4_i32 : i32 to vector<2x8xi32>
      %22 = arith.muli %19, %21 : vector<2x8xi32>
      %23 = arith.cmpi sge, %20, %22 : vector<2x8xi32>
      %c4_i32_12 = arith.constant 4 : i32
      %24 = vector.broadcast %c4_i32_12 : i32 to vector<2x8xi32>
      %25 = arith.addi %22, %24 : vector<2x8xi32>
      %26 = arith.cmpi slt, %20, %25 : vector<2x8xi32>
      %27 = arith.andi %23, %26 : vector<2x8xi1>
      %28 = arith.extui %27 : vector<2x8xi1> to vector<2x8xi32>
      %29 = arith.sitofp %28 : vector<2x8xi32> to vector<2x8xf32>
      %cst_13 = arith.constant dense<0.000000e+00> : vector<2x128xf32>
      %30 = tpu.matmul %29, %18, %cst_13 {dimension_numbers = #tpu.dot_dimension_numbers<[1], [0], [0], [1], [0, 0, 1, 1], [], []>} : vector<2x8xf32>, vector<8x128xf32>, vector<2x128xf32> -> vector<2x128xf32>
      %c0_14 = arith.constant 0 : index
      %c0_15 = arith.constant 0 : index
      %31 = vector.load %arg4[%c0_14, %c0_15] : memref<1x128xf32, #tpu.memory_space<vmem>>, vector<1x128xf32>
      %32 = vector.broadcast %31 : vector<1x128xf32> to vector<2x128xf32>
      %33 = arith.addf %30, %32 : vector<2x128xf32>
      %cst_16 = arith.constant 0.000000e+00 : f32
      %34 = vector.broadcast %cst_16 : f32 to vector<2x128xf32>
      %35 = arith.maximumf %33, %34 : vector<2x128xf32>
      %c0_17 = arith.constant 0 : index
      %c0_18 = arith.constant 0 : index
      %36 = vector.load %arg5[%c0_17, %c0_18] : memref<128x7xf32, #tpu.memory_space<vmem>>, vector<128x7xf32>
      %cst_19 = arith.constant dense<0.000000e+00> : vector<2x7xf32>
      %37 = tpu.matmul %35, %36, %cst_19 {dimension_numbers = #tpu.dot_dimension_numbers<[1], [0], [0], [1], [0, 0, 1, 1], [], []>} : vector<2x128xf32>, vector<128x7xf32>, vector<2x7xf32> -> vector<2x7xf32>
      %c0_20 = arith.constant 0 : index
      %c0_21 = arith.constant 0 : index
      %38 = vector.load %arg6[%c0_20, %c0_21] : memref<1x7xf32, #tpu.memory_space<vmem>>, vector<1x7xf32>
      %39 = vector.broadcast %38 : vector<1x7xf32> to vector<2x7xf32>
      %40 = arith.addf %37, %39 : vector<2x7xf32>
      %cst_22 = arith.constant dense<0xFF800000> : vector<2xf32>
      %41 = vector.multi_reduction <maximumf>, %40, %cst_22 [1] : vector<2x7xf32> to vector<2xf32>
      %42 = vector.shape_cast %41 : vector<2xf32> to vector<2x1xf32>
      %43 = vector.broadcast %42 : vector<2x1xf32> to vector<2x7xf32>
      %44 = arith.subf %40, %43 : vector<2x7xf32>
      %45 = math.exp %44 : vector<2x7xf32>
      %cst_23 = arith.constant dense<0.000000e+00> : vector<2xf32>
      %46 = vector.multi_reduction <add>, %45, %cst_23 [1] : vector<2x7xf32> to vector<2xf32>
      %47 = vector.shape_cast %46 : vector<2xf32> to vector<2x1xf32>
      %48 = math.log %47 : vector<2x1xf32>
      %49 = vector.broadcast %48 : vector<2x1xf32> to vector<2x7xf32>
      %50 = arith.subf %44, %49 : vector<2x7xf32>
      %c0_24 = arith.constant 0 : index
      %c0_25 = arith.constant 0 : index
      %51 = vector.load %arg7[%c0_24, %c0_25] : memref<2x7xf32, #tpu.memory_space<vmem>>, vector<2x7xf32>
      tpu.vector_store %arg7[%c0_24, %c0_25], %50 {strides = array<i32>} : memref<2x7xf32, #tpu.memory_space<vmem>>, vector<2x7xf32>,
    } else {
    }
    return
  }
  func.func @transform_0(%arg0: i32, %arg1: i32) -> (i32, i32) {
    %c0_i32 = arith.constant 0 : i32
    return %arg0, %arg1 : i32, i32
  }
  func.func @transform_1(%arg0: i32, %arg1: i32) -> (i32, i32) {
    %c0_i32 = arith.constant 0 : i32
    %c0_i32_0 = arith.constant 0 : i32
    %c0_i32_1 = arith.constant 0 : i32
    return %c0_i32, %c0_i32_0 : i32, i32
  }
  func.func @transform_2(%arg0: i32, %arg1: i32) -> (i32, i32) {
    %c0_i32 = arith.constant 0 : i32
    %c0_i32_0 = arith.constant 0 : i32
    %c0_i32_1 = arith.constant 0 : i32
    return %c0_i32, %c0_i32_0 : i32, i32
  }
  func.func @transform_3(%arg0: i32, %arg1: i32) -> (i32, i32) {
    %c0_i32 = arith.constant 0 : i32
    %c0_i32_0 = arith.constant 0 : i32
    %c0_i32_1 = arith.constant 0 : i32
    return %c0_i32, %c0_i32_0 : i32, i32
  }
  func.func @transform_4(%arg0: i32, %arg1: i32) -> (i32, i32) {
    %c0_i32 = arith.constant 0 : i32
    %c0_i32_0 = arith.constant 0 : i32
    %c0_i32_1 = arith.constant 0 : i32
    return %c0_i32, %c0_i32_0 : i32, i32
  }
  func.func @transform_5(%arg0: i32, %arg1: i32) -> (i32, i32) {
    %c0_i32 = arith.constant 0 : i32
    %c0_i32_0 = arith.constant 0 : i32
    return %arg0, %c0_i32 : i32, i32
  }
}

</mosaic_0001>

<llo_original>
// kernel: tpu_custom_call.1
$region0: #{tpu_custom_call.1}
  #allocation0 [shape = 'u32[]', space=smem, size = 0x4, offset = 0x4, fixed_abs, tag = 'smem constant byte address 0x4 - core index']
  #allocation1 [shape = 'u32[72,128]{1,0:T(1,128)}', space=vmem, size = 0x9000, scoped, tag = 'internal scratch']
  #allocation2 [shape = 'f32[8,128]{1,0:T(8,128)}', space=vmem, size = 0x1000, scoped, tag = 'scratch operand']
  %s0 = inlined_call_operand.vmem [shape: bf16[8,256], index: 0, kind: input, shape index: {}]
  %s1 = inlined_call_operand.vmem [shape: f32[8,128], index: 1, kind: input, shape index: {}]
  %s2 = inlined_call_operand.vmem [shape: f32[1,128], index: 2, kind: input, shape index: {}]
  %s3 = inlined_call_operand.vmem [shape: f32[128,7], index: 3, kind: input, shape index: {}]
  %s4 = inlined_call_operand.vmem [shape: f32[1,7], index: 4, kind: input, shape index: {}]
  %s5 = inlined_call_operand.hbm [shape: f32[2,7], index: 5, kind: output, shape index: {}]
  %s6 = sld [smem:[#allocation0]]
  $region61: #{tpu_custom_call.1} parent=0
    _
  %s8 = ssub.s32 1, %s6
  %s9 = scalar_select 0, %s8, %s6
  $region1: #{tpu_custom_call.1} parent=0
    #allocation3 [shape = 'u8[1024]{0}', space=vmem, size = 0x400, scoped, tag = 'output window, operand 0, single buffered']
    #allocation4 [shape = 's32[2]{0}', space=sflag, size = 0x8, scoped, tag = 'scoped memory for tpu_custom_call.1']
    %10 = vsyncpa [#allocation4], 0
    loop: start=0, step=1, limit=4
    $region2: #{tpu_custom_call.1} parent=1 // loop_pre_header
      _
    $region3: #{tpu_custom_call.1} parent=1 // loop_header
      %s12 = sphi 0, %s16
      %p13 = scmp.ge.s32.totalorder %s12, 4
      %s19 = sphi 0, %s31
      %s20 = sphi 0, %s27
      %s21 = sphi 0, %s19
      %s22 = sphi 0, %s20
      %s23 = sphi 0, %s21
      %s24 = sphi 0, %s22
      %s36 = sphi 0, %s38
      %s39 = sphi 0, %s36
      %s40 = sphi 0, %s39
      %s56 = sphi 0, %s40
      %s60 = sphi 0, %s60
      %s62 = sphi 0, %s60
      %s63 = sphi 0, %s62
      %s77 = sphi 0, %s63
      %s81 = sphi 0, %s81
      %s83 = sphi 0, %s81
      %s84 = sphi 0, %s83
      %s98 = sphi 0, %s84
      %s102 = sphi 0, %s102
      %s104 = sphi 0, %s102
      %s105 = sphi 0, %s104
      %s119 = sphi 0, %s105
      %s123 = sphi 0, %s123
      %s125 = sphi 0, %s123
      %s126 = sphi 0, %s125
      %s140 = sphi 0, %s126
      %s146 = sphi 0, %s148
      %s149 = sphi 0, %s146
      %s150 = sphi 0, %s149
      %s166 = sphi 0, %s150
    $region4: #{tpu_custom_call.1} parent=1 // loop_header_branch
      %15 = sbr.rel (%p13) target = $region8
    $region5: #{tpu_custom_call.1} parent=1 // loop_body
      %s17 = ssub.s32 %s12, 1
      %s18 = ssub.s32 %s12, 2
      %s25 = sadd.s32 1, %s20
      %p26 = scmp.ge.s32.totalorder %s25, 2
      %s27 = scalar_select %p26, 0, %s25
      %s28 = sadd.s32 1, %s19
      %s29 = scalar_select %p26, %s28, %s19
      %p30 = scmp.ge.s32.totalorder %s29, 1
      %s31 = scalar_select %p30, 0, %s29
      %s32 = ssub.s32 %s19, %s31
      %s33 = ssub.s32 %s20, %s27
      %s34 = sor.u32 %s32, %s33
      %p35 = scmp.eq.s32.totalorder %s34, 0
      %s37 = sadd.s32 %s36, 1
      %s38 = scalar_select %p35, %s36, %s37
      %p41 = pneg %p35
      %p42 = scmp.eq.s32.totalorder %s12, 1
      %p43 = por %p41, %p42
      %p44 = scmp.ne.s32.totalorder %s36, %s39
      %p45 = scmp.eq.s32.totalorder %s12, 0
      %p46 = por %p44, %p45
      %p47 = scmp.ne.s32.totalorder %s36, %s39
      %p48 = scmp.eq.s32.totalorder %s17, 1
      %p49 = por %p47, %p48
      %p50 = scmp.ne.s32.totalorder %s39, %s40
      %p51 = scmp.eq.s32.totalorder %s17, 0
      %p52 = por %p50, %p51
      %p53 = scmp.ne.s32.totalorder %s39, %s40
      %p54 = scmp.eq.s32.totalorder %s18, 1
      %p55 = por %p53, %p54
      %p57 = scmp.ne.s32.totalorder %s40, %s56
      %p58 = scmp.eq.s32.totalorder %s18, 0
      %p59 = por %p57, %p58
      %s61 = sadd.s32 %s60, 1
      %p64 = scmp.eq.s32.totalorder %s12, 1
      %p65 = scmp.ne.s32.totalorder %s60, %s62
      %p66 = scmp.eq.s32.totalorder %s12, 0
      %p67 = por %p65, %p66
      %p68 = scmp.ne.s32.totalorder %s60, %s62
      %p69 = scmp.eq.s32.totalorder %s17, 1
      %p70 = por %p68, %p69
      %p71 = scmp.ne.s32.totalorder %s62, %s63
      %p72 = scmp.eq.s32.totalorder %s17, 0
      %p73 = por %p71, %p72
      %p74 = scmp.ne.s32.totalorder %s62, %s63
      %p75 = scmp.eq.s32.totalorder %s18, 1
      %p76 = por %p74, %p75
      %p78 = scmp.ne.s32.totalorder %s63, %s77
      %p79 = scmp.eq.s32.totalorder %s18, 0
      %p80 = por %p78, %p79
      %s82 = sadd.s32 %s81, 1
      %p85 = scmp.eq.s32.totalorder %s12, 1
      %p86 = scmp.ne.s32.totalorder %s81, %s83
      %p87 = scmp.eq.s32.totalorder %s12, 0
      %p88 = por %p86, %p87
      %p89 = scmp.ne.s32.totalorder %s81, %s83
      %p90 = scmp.eq.s32.totalorder %s17, 1
      %p91 = por %p89, %p90
      %p92 = scmp.ne.s32.totalorder %s83, %s84
      %p93 = scmp.eq.s32.totalorder %s17, 0
      %p94 = por %p92, %p93
      %p95 = scmp.ne.s32.totalorder %s83, %s84
      %p96 = scmp.eq.s32.totalorder %s18, 1
      %p97 = por %p95, %p96
      %p99 = scmp.ne.s32.totalorder %s84, %s98
      %p100 = scmp.eq.s32.totalorder %s18, 0
      %p101 = por %p99, %p100
      %s103 = sadd.s32 %s102, 1
      %p106 = scmp.eq.s32.totalorder %s12, 1
      %p107 = scmp.ne.s32.totalorder %s102, %s104
      %p108 = scmp.eq.s32.totalorder %s12, 0
      %p109 = por %p107, %p108
      %p110 = scmp.ne.s32.totalorder %s102, %s104
      %p111 = scmp.eq.s32.totalorder %s17, 1
      %p112 = por %p110, %p111
      %p113 = scmp.ne.s32.totalorder %s104, %s105
      %p114 = scmp.eq.s32.totalorder %s17, 0
      %p115 = por %p113, %p114
      %p116 = scmp.ne.s32.totalorder %s104, %s105
      %p117 = scmp.eq.s32.totalorder %s18, 1
      %p118 = por %p116, %p117
      %p120 = scmp.ne.s32.totalorder %s105, %s119
      %p121 = scmp.eq.s32.totalorder %s18, 0
      %p122 = por %p120, %p121
      %s124 = sadd.s32 %s123, 1
      %p127 = scmp.eq.s32.totalorder %s12, 1
      %p128 = scmp.ne.s32.totalorder %s123, %s125
      %p129 = scmp.eq.s32.totalorder %s12, 0
      %p130 = por %p128, %p129
      %p131 = scmp.ne.s32.totalorder %s123, %s125
      %p132 = scmp.eq.s32.totalorder %s17, 1
      %p133 = por %p131, %p132
      %p134 = scmp.ne.s32.totalorder %s125, %s126
      %p135 = scmp.eq.s32.totalorder %s17, 0
      %p136 = por %p134, %p135
      %p137 = scmp.ne.s32.totalorder %s125, %s126
      %p138 = scmp.eq.s32.totalorder %s18, 1
      %p139 = por %p137, %p138
      %p141 = scmp.ne.s32.totalorder %s126, %s140
      %p142 = scmp.eq.s32.totalorder %s18, 0
      %p143 = por %p141, %p142
      %s144 = ssub.s32 %s19, %s31
      %p145 = scmp.eq.s32.totalorder %s144, 0
      %s147 = sadd.s32 %s146, 1
      %s148 = scalar_select %p145, %s146, %s147
      %p151 = pneg %p145
      %p152 = scmp.eq.s32.totalorder %s12, 1
      %p153 = por %p151, %p152
      %p154 = scmp.ne.s32.totalorder %s146, %s149
      %p155 = scmp.eq.s32.totalorder %s12, 0
      %p156 = por %p154, %p155
      %p157 = scmp.ne.s32.totalorder %s146, %s149
      %p158 = scmp.eq.s32.totalorder %s17, 1
      %p159 = por %p157, %p158
      %p160 = scmp.ne.s32.totalorder %s149, %s150
      %p161 = scmp.eq.s32.totalorder %s17, 0
      %p162 = por %p160, %p161
      %p163 = scmp.ne.s32.totalorder %s149, %s150
      %p164 = scmp.eq.s32.totalorder %s18, 1
      %p165 = por %p163, %p164
      %p167 = scmp.ne.s32.totalorder %s150, %s166
      %p168 = scmp.eq.s32.totalorder %s18, 0
      %p169 = por %p167, %p168
      %p170 = scmp.le.s32.totalorder 1, %s12
      %p171 = scmp.lt.s32.totalorder %s12, 3
      %p172 = pnand %p170, %p171
      %p173 = pneg %p172
      // Predicated region
      $region9: #{tpu_custom_call.1} parent=5 // pred_check
        _
      $region10: #{tpu_custom_call.1} parent=5 // pred_check_branch
        %175 = sbr.rel (%p172) target = $region12
      $region11: #{tpu_custom_call.1} parent=5 // pred_region
        %s176 = ssub.s32 %s12, 1
        // Predicated region
        $region13: #{tpu_custom_call.1} parent=11 // pred_check
          %p177 = pneg %p73
        $region14: #{tpu_custom_call.1} parent=11 // pred_check_branch
          %179 = sbr.rel (%p177) target = $region16
        $region15: #{tpu_custom_call.1} parent=11 // pred_region
          _
        $region16: #{tpu_custom_call.1} parent=11 // pred_fallthru
          _
        // Predicated region
        $region17: #{tpu_custom_call.1} parent=11 // pred_check
          %p180 = pneg %p94
        $region18: #{tpu_custom_call.1} parent=11 // pred_check_branch
          %182 = sbr.rel (%p180) target = $region20
        $region19: #{tpu_custom_call.1} parent=11 // pred_region
          _
        $region20: #{tpu_custom_call.1} parent=11 // pred_fallthru
          _
        // Predicated region
        $region21: #{tpu_custom_call.1} parent=11 // pred_check
          %p183 = pneg %p115
        $region22: #{tpu_custom_call.1} parent=11 // pred_check_branch
          %185 = sbr.rel (%p183) target = $region24
        $region23: #{tpu_custom_call.1} parent=11 // pred_region
          _
        $region24: #{tpu_custom_call.1} parent=11 // pred_fallthru
          _
        // Predicated region
        $region25: #{tpu_custom_call.1} parent=11 // pred_check
          %p186 = pneg %p136
        $region26: #{tpu_custom_call.1} parent=11 // pred_check_branch
          %188 = sbr.rel (%p186) target = $region28
        $region27: #{tpu_custom_call.1} parent=11 // pred_region
          _
        $region28: #{tpu_custom_call.1} parent=11 // pred_fallthru
          _
      $region12: #{tpu_custom_call.1} parent=5 // pred_fallthru
        _
      %p189 = scmp.lt.s32.totalorder %s12, 2
      // Predicated region
      $region29: #{tpu_custom_call.1} parent=5 // pred_check
        %p190 = pneg %p189
      $region30: #{tpu_custom_call.1} parent=5 // pred_check_branch
        %192 = sbr.rel (%p190) target = $region32
      $region31: #{tpu_custom_call.1} parent=5 // pred_region
        // Predicated region
        $region33: #{tpu_custom_call.1} parent=31 // pred_check
          %p193 = pneg %p46
        $region34: #{tpu_custom_call.1} parent=31 // pred_check_branch
          %195 = sbr.rel (%p193) target = $region36
        $region35: #{tpu_custom_call.1} parent=31 // pred_region
          %p196 = scmp.lt.s32.totalorder %s19, 0
          %s197 = scalar_select %p196, %s19, 0
          %p198 = scmp.lt.s32.totalorder %s20, 1
          %s199 = scalar_select %p198, %s20, 1
          %s200 = smul.addr %s197, 2
          %s201 = sadd.s32 %s199, %s200
          %s202 = smul.addr %s201, 4
          %s203 = scalar_lea.vmem %s0, %s202
        $region36: #{tpu_custom_call.1} parent=31 // pred_fallthru
          _
      $region32: #{tpu_custom_call.1} parent=5 // pred_fallthru
        _
      %p204 = scmp.le.s32.totalorder 1, %s12
      %p205 = scmp.lt.s32.totalorder %s12, 3
      %p206 = pnand %p204, %p205
      %p207 = pneg %p206
      // Predicated region
      $region37: #{tpu_custom_call.1} parent=5 // pred_check
        _
      $region38: #{tpu_custom_call.1} parent=5 // pred_check_branch
        %209 = sbr.rel (%p206) target = $region40
      $region39: #{tpu_custom_call.1} parent=5 // pred_region
        %s210 = ssub.s32 %s12, 1
        %p211 = scmp.lt.s32.totalorder %s21, 0
        %s212 = scalar_select %p211, %s21, 0
        %p213 = scmp.lt.s32.totalorder %s22, 1
        %s214 = scalar_select %p213, %s22, 1
        %s215 = smul.addr %s212, 2
        %s216 = sadd.s32 %s214, %s215
        %s217 = smul.addr %s216, 4
        %s218 = scalar_lea.vmem %s0, %s217
        %p219 = pneg %p52
        %p220 = pneg %p49
        %p221 = pneg %p73
        %p222 = pneg %p70
        %p223 = pneg %p94
        %p224 = pneg %p91
        %p225 = pneg %p115
        %p226 = pneg %p112
        %p227 = pneg %p136
        %p228 = pneg %p133
        %p229 = pneg %p162
        %p230 = pneg %p159
        %p231 = scmp.lt.s32.totalorder %s21, 0
        %s232 = scalar_select %p231, %s21, 0
        %p233 = scmp.lt.s32.totalorder %s22, 1
        %s234 = scalar_select %p233, %s22, 1
        %s235 = smul.addr %s232, 2
        %s236 = sadd.s32 %s234, %s235
        %s237 = smul.addr %s236, 4
        %s238 = scalar_lea.vmem %s0, %s237
        %p239 = scmp.eq.s32.totalorder %s22, 0
        // Predicated region
        $region41: #{tpu_custom_call.1} parent=39 // pred_check
          %p240 = pneg %p239
        $region42: #{tpu_custom_call.1} parent=39 // pred_check_branch
          %242 = sbr.rel (%p240) target = $region44
        $region43: #{tpu_custom_call.1} parent=39 // pred_region
          %243 = vst [vmem:[#allocation2] sm:$0xff] 0.0
        $region44: #{tpu_custom_call.1} parent=39 // pred_fallthru
          _
        %v244 = vld [vmem:[#allocation2] sm:$0xff]
        %v245 = vld [vmem:[%s238] sm:$0xf]
        %v246 = vunpack.c.l.bf16 %v245
        %v247 = vmul.f32 %v246, 0.00390625
        %v248 = vadd.f32 %v244, %v247
        %249 = vst [vmem:[#allocation2] sm:$0xff] %v248
        %p250 = scmp.eq.s32.totalorder %s22, 1
        // Predicated region
        $region45: #{tpu_custom_call.1} parent=39 // pred_check
          %p251 = pneg %p250
        $region46: #{tpu_custom_call.1} parent=39 // pred_check_branch
          %253 = sbr.rel (%p251) target = $region48
        $region47: #{tpu_custom_call.1} parent=39 // pred_region
          %v254 = vld [vmem:[#allocation2] sm:$0xff]
          %255 = vadd.xlane.f32.xlu0 %v254
          %v256 = vpop.xlane.xlu0 %255
          %v257 = vld [vmem:[%s1] sm:$0xff]
          %v258 = vmul.f32 %v256, %v257
          %v259 = vlaneseq
          %v260 = vshrl.u32 %v259, 7
          %v261 = vlaneseq
          %v262 = vand.u32 %v261, 127
          %v263 = vmul.u32 %v260, 4
          %vm264 = vcmp.ge.s32.totalorder %v262, %v263
          %v265 = vadd.s32 %v263, 4
          %vm266 = vcmp.lt.s32.totalorder %v262, %v265
          %vm267 = vmand %vm264, %vm266
          %v268 = vsel %vm267, 1, 0
          %v269 = vcvt.s32.f32 %v268
          %v270 = vld [vmem:[%s2] sm:$0x1]
          %v272 = vperm.slane %v270, 0
          %vm274 = vcmask 64512
          %v276 = vsel %vm274, %v269, 0
          %278 = vmatpush.msra.mxu0 0.0
          %279 = vmatpush.msra.mxu0 0.0
          %280 = vmatpush.msra.mxu0 0.0
          %281 = vmatpush.msra.mxu0 0.0
          %282 = vmatpush.msra.mxu0 0.0
          %283 = vmatpush.msra.mxu0 0.0
          %284 = vmatpush.msra.mxu0 0.0
          %285 = vmatpush.msra.mxu0 0.0
          %286 = vmatpush.msra.mxu0 0.0
          %287 = vmatpush.msra.mxu0 0.0
          %288 = vmatpush.msra.mxu0 0.0
          %289 = vmatpush.msra.mxu0 0.0
          %290 = vmatpush.msra.mxu0 0.0
          %291 = vmatpush.msra.mxu0 0.0
          %292 = vmatpush.msra.mxu0 0.0
          %293 = vmatpush.msra.mxu0 %v258
          %294 = vmatmul.f32.gmra.mxu0 %v276
          %v295 = vpop.f32.mrf.mxu0
          %v296 = vadd.f32 %v272, %v295
          %297 = vdwg.mxu0
          %v298 = vmax.f32 %v296, 0.0
          %v299 = vld [vmem:[%s3] sm:$0xff]
          %v300 = vld [vmem:[%s3 + $0x8] sm:$0xff]
          %v301 = vld [vmem:[%s3 + $0x10] sm:$0xff]
          %v302 = vld [vmem:[%s3 + $0x18] sm:$0xff]
          %v303 = vld [vmem:[%s3 + $0x20] sm:$0xff]
          %v304 = vld [vmem:[%s3 + $0x28] sm:$0xff]
          %v305 = vld [vmem:[%s3 + $0x30] sm:$0xff]
          %v306 = vld [vmem:[%s3 + $0x38] sm:$0xff]
          %v307 = vld [vmem:[%s3 + $0x40] sm:$0xff]
          %v308 = vld [vmem:[%s3 + $0x48] sm:$0xff]
          %v309 = vld [vmem:[%s3 + $0x50] sm:$0xff]
          %v310 = vld [vmem:[%s3 + $0x58] sm:$0xff]
          %v311 = vld [vmem:[%s3 + $0x60] sm:$0xff]
          %v312 = vld [vmem:[%s3 + $0x68] sm:$0xff]
          %v313 = vld [vmem:[%s3 + $0x70] sm:$0xff]
          %v314 = vld [vmem:[%s3 + $0x78] sm:$0xff]
          %v315 = vld [vmem:[%s4] sm:$0x1]
          %v317 = vperm.slane %v315, 0
          %319 = vmatpush.msra.mxu0 %v314
          %320 = vmatpush.msra.mxu0 %v313
          %321 = vmatpush.msra.mxu0 %v312
          %322 = vmatpush.msra.mxu0 %v311
          %323 = vmatpush.msra.mxu0 %v310
          %324 = vmatpush.msra.mxu0 %v309
          %325 = vmatpush.msra.mxu0 %v308
          %326 = vmatpush.msra.mxu0 %v307
          %327 = vmatpush.msra.mxu0 %v306
          %328 = vmatpush.msra.mxu0 %v305
          %329 = vmatpush.msra.mxu0 %v304
          %330 = vmatpush.msra.mxu0 %v303
          %331 = vmatpush.msra.mxu0 %v302
          %332 = vmatpush.msra.mxu0 %v301
          %333 = vmatpush.msra.mxu0 %v300
          %334 = vmatpush.msra.mxu0 %v299
          %335 = vmatmul.f32.gmra.mxu0 %v298
          %v336 = vpop.f32.mrf.mxu0
          %v337 = vadd.f32 %v317, %v336
          %338 = vdwg.mxu0
          %vm339 = vcmask 50176
          %v340 = vsel %vm339, %v337, -inf
          %341 = vmax.xlane.f32.xlu0 %v340
          %v342 = vpop.xlane.xlu0 %341
          %v343 = vsub.f32 %v337, %v342
          %v344 = vmul.f32 %v343, 1.442695
          %v345 = vpow.pop %v344
          %v346 = vsel %vm339, %v345, 0.0
          %347 = vadd.xlane.f32.xlu0 %v346
          %v348 = vpop.xlane.xlu0 %347
          %v349 = vlog2.pop %v348
          %v350 = vmul.f32 %v349, 0.6931472
          %v351 = vsub.f32 %v343, %v350
          %352 = vst.msk [vmem:[#allocation3] sm:$0x3] %vm339, %v351
        $region48: #{tpu_custom_call.1} parent=39 // pred_fallthru
          _
        // Predicated region
        $region49: #{tpu_custom_call.1} parent=39 // pred_check
          %p353 = pneg %p159
        $region50: #{tpu_custom_call.1} parent=39 // pred_check_branch
          %355 = sbr.rel (%p353) target = $region52
        $region51: #{tpu_custom_call.1} parent=39 // pred_region
          %357 = vsyncadd [#allocation4], 0
          %s358 = smul.addr %s21, 2
          %s359 = scalar_lea.hbm %s5, %s358
          %s361 = sshll.u32 [#allocation3], 4
          %s362 = int_to_ptr.vmem [resolvable:$true] %s361
          %s363 = sshll.u32 %s359, 4
          %s364 = int_to_ptr.hbm [resolvable:$true] %s363
          %366 = dma.vmem_to_hbm [thread:$0]  %s362, 32, %s364, [#allocation4]
        $region52: #{tpu_custom_call.1} parent=39 // pred_fallthru
          _
        // Predicated region
        $region53: #{tpu_custom_call.1} parent=39 // pred_check
          %p367 = pneg %p159
        $region54: #{tpu_custom_call.1} parent=39 // pred_check_branch
          %369 = sbr.rel (%p367) target = $region56
        $region55: #{tpu_custom_call.1} parent=39 // pred_region
          %371 = dma.done [#allocation4], 32
        $region56: #{tpu_custom_call.1} parent=39 // pred_fallthru
          _
      $region40: #{tpu_custom_call.1} parent=5 // pred_fallthru
        _
      %p372 = scmp.le.s32.totalorder 2, %s12
      // Predicated region
      $region57: #{tpu_custom_call.1} parent=5 // pred_check
        %p373 = pneg %p372
      $region58: #{tpu_custom_call.1} parent=5 // pred_check_branch
        %375 = sbr.rel (%p373) target = $region60
      $region59: #{tpu_custom_call.1} parent=5 // pred_region
        %s376 = ssub.s32 %s12, 2
      $region60: #{tpu_custom_call.1} parent=5 // pred_fallthru
        _
    $region6: #{tpu_custom_call.1} parent=1 // loop_footer
      %s16 = sadd.s32 1, %s12
    $region7: #{tpu_custom_call.1} parent=1 // loop_footer_branch
      %11 = sbr.rel target = $region3
    $region8: #{tpu_custom_call.1} parent=1 // loop_exit
      _
    %377 = vsyncpa [#allocation4], 1
    %s378 = scalar_lea.sflag [#allocation4], 1
    %379 = vsyncpa %s378, 1

</llo_original>
